<compile_context>
chip_gen: v5e
topology: v5e:2x2
jax: 0.10.0
libtpu: 0.0.40
codegen_flags: <defaults>
</compile_context>

<pallas_src>
import functools

import numpy as np
import jax
import jax.numpy as jnp
from jax import lax
from jax.experimental import pallas as pl
from jax.experimental.pallas import tpu as pltpu


# ----------------------------------------------------------------------------
# Exact numpy port of the reference `get_kernel` helper (deterministic).
# ----------------------------------------------------------------------------
def get_kernel(factor, kernel_type, phase, kernel_width, support=None, sigma=None):
    assert kernel_type in ['lanczos', 'gauss', 'box']
    if phase == 0.5 and kernel_type != 'box':
        kernel = np.zeros([kernel_width - 1, kernel_width - 1])
    else:
        kernel = np.zeros([kernel_width, kernel_width])
    if kernel_type == 'box':
        assert phase == 0.5, 'Box filter is always half-phased'
        kernel[:] = 1.0 / (kernel_width * kernel_width)
    elif kernel_type == 'gauss':
        assert sigma, 'sigma is not specified'
        assert phase != 0.5, 'phase 1/2 for gauss not implemented'
        center = (kernel_width + 1.0) / 2.0
        sigma_sq = sigma * sigma
        for i in range(1, kernel.shape[0] + 1):
            for j in range(1, kernel.shape[1] + 1):
                di = (i - center) / 2.0
                dj = (j - center) / 2.0
                kernel[i - 1][j - 1] = np.exp(-(di * di + dj * dj) / (2 * sigma_sq))
                kernel[i - 1][j - 1] = kernel[i - 1][j - 1] / (2.0 * np.pi * sigma_sq)
    elif kernel_type == 'lanczos':
        assert support, 'support is not specified'
        center = (kernel_width + 1) / 2.0
        for i in range(1, kernel.shape[0] + 1):
            for j in range(1, kernel.shape[1] + 1):
                if phase == 0.5:
                    di = abs(i + 0.5 - center) / factor
                    dj = abs(j + 0.5 - center) / factor
                else:
                    di = abs(i - center) / factor
                    dj = abs(j - center) / factor
                val = 1
                if di != 0:
                    val = val * support * np.sin(np.pi * di) * np.sin(np.pi * di / support)
                    val = val / (np.pi * np.pi * di * di)
                if dj != 0:
                    val = val * support * np.sin(np.pi * dj) * np.sin(np.pi * dj / support)
                    val = val / (np.pi * np.pi * dj * dj)
                kernel[i - 1][j - 1] = val
    else:
        assert False, 'wrong method name'
    kernel /= kernel.sum()
    return kernel


# ----------------------------------------------------------------------------
# Host-side helpers (pure numpy; run once at call time, deterministic).
# ----------------------------------------------------------------------------
def _separable_1d(kernel2d):
    """Rank-1 factorization kernel2d == outer(kr, kc) (exact to ~1e-16)."""
    k = np.asarray(kernel2d, dtype=np.float64)
    u, s, vt = np.linalg.svd(k)
    kr = u[:, 0] * np.sqrt(s[0])
    kc = vt[0, :] * np.sqrt(s[0])
    if kr.sum() < 0:          # sign-normalize (product is unchanged)
        kr, kc = -kr, -kc
    return kr, kc


def _banded_matrices(kernel2d, stride, h, w):
    """Row-pass (Ho x H) and column-pass (W x Wo) banded matrices for VALID conv."""
    kh, kw = kernel2d.shape
    ho = (h - kh) // stride + 1
    wo = (w - kw) // stride + 1
    kr, kc = _separable_1d(kernel2d)
    a_mat = np.zeros((ho, h), dtype=np.float32)
    for i in range(ho):
        a_mat[i, stride * i: stride * i + kh] = kr
    b_mat = np.zeros((w, wo), dtype=np.float32)
    for j in range(wo):
        b_mat[stride * j: stride * j + kw, j] = kc
    return a_mat, b_mat, ho, wo


def _vmem_capacity_bytes():
    """Generation-aware VMEM capacity (v5e/v6e: 128 MiB, v7x: 64 MiB)."""
    try:
        return int(pltpu.get_tpu_info().vmem_capacity_bytes)
    except Exception:
        return 64 << 20   # conservative fallback (assume v7x-sized VMEM)


def _working_set_bytes(tc, h, w, ho, wo):
    """f32 VMEM working set for one grid step:
    double-buffered x and out blocks, double-buffered (constant-index) A/B,
    plus the single-buffered (tc*H, Wo) intermediate scratch."""
    return 4 * (2 * tc * h * w + 2 * ho * h + 2 * w * wo + 2 * tc * ho * wo + tc * h * wo)


def _pick_channel_tile(nc, h, w, ho, wo, budget_bytes, x_block_target=12 << 20):
    """Pick the channel-tile size tc (a divisor of N*C)."""
    divisors = [d for d in range(1, nc + 1) if nc % d == 0]
    fits = [d for d in divisors if _working_set_bytes(d, h, w, ho, wo) <= budget_bytes]
    if not fits:
        # TODO(synk): images this large need halo'd Ho-row tiling (banded A
        # sub-blocks); fall back to one channel per step.
        return 1
    # Small-problem regime: whole problem in one grid step (no per-step overhead).
    if nc in fits and nc * h * w * 4 <= x_block_target:
        return nc
    # Otherwise: biggest tile that respects both the VMEM budget and the
    # per-step input-block target (keeps >=2 steps so DMA can pipeline).
    cand = [d for d in fits if d * h * w * 4 <= x_block_target] or fits
    tc = max(cand)
    # Prefer an even (>=2) number of grid steps for v7x megacore sharding when a
    # nearly-as-large tile achieves it.
    even = [d for d in cand if d < nc and (nc // d) % 2 == 0]
    if even and max(even) * 2 >= tc:
        tc = max(even)
    return tc


# ----------------------------------------------------------------------------
# Pallas kernel:
#   y  = reshape(x, (tc*H, W)) @ B        -- ONE dense MXU matmul (fused B pass)
#   out[c] = A @ y[c*H : (c+1)*H, :]      -- small per-channel row pass
# ----------------------------------------------------------------------------
def _downsample_matmul_kernel(a_ref, x_ref, b_ref, o_ref, y_ref, *, tc, h):
    # a_ref : (Ho, H)        f32  row-pass banded matrix (constant across grid)
    # x_ref : (tc, H, W)     f32  tile of flattened N*C channel images
    # b_ref : (W, Wo)        f32  column-pass banded matrix (constant across grid)
    # o_ref : (tc, Ho, Wo)   f32
    # y_ref : (tc*H, Wo)     f32  VMEM scratch (column-pass intermediate)
    w = x_ref.shape[2]
    x2d = x_ref[...].reshape(tc * h, w)                       # free when H % 8 == 0
    y_ref[...] = jnp.dot(x2d, b_ref[...], preferred_element_type=jnp.float32)

    a = a_ref[...]

    def row_pass(c, carry):
        start = pl.multiple_of(c * h, h)
        yc = y_ref[pl.ds(start, h), :]                        # (H, Wo)
        o_ref[c] = jnp.dot(a, yc, preferred_element_type=jnp.float32)
        return carry

    lax.fori_loop(0, tc, row_pass, 0, unroll=(tc <= 8))


def downsample_pallas(x, kernel, stride):
    """x: (N, C, H, W) NCHW; kernel: (Kh, Kw) numpy; returns (N, C, Ho, Wo) f32."""
    n, c, h, w = x.shape
    kh, kw = kernel.shape
    assert h >= kh and w >= kw, "input smaller than the resampling kernel"

    a_mat, b_mat, ho, wo = _banded_matrices(kernel, stride, h, w)

    nc = n * c
    xf = x.reshape(nc, h, w).astype(jnp.float32)   # free reshape, no transpose/copy

    cap = _vmem_capacity_bytes()
    budget = int(cap * 0.7)                        # headroom for compiler temporaries
    tc = _pick_channel_tile(nc, h, w, ho, wo, budget)
    grid = (nc // tc,)

    ws = _working_set_bytes(tc, h, w, ho, wo)
    vmem_limit = int(min(cap - (2 << 20), max(ws * 5 // 4 + (1 << 20), 32 << 20)))

    kern = functools.partial(_downsample_matmul_kernel, tc=tc, h=h)
    out = pl.pallas_call(
        kern,
        out_shape=jax.ShapeDtypeStruct((nc, ho, wo), jnp.float32),
        grid=grid,
        in_specs=[
            pl.BlockSpec((ho, h), lambda i: (0, 0)),         # A, resident in VMEM
            pl.BlockSpec((tc, h, w), lambda i: (i, 0, 0)),   # channel-image tile
            pl.BlockSpec((w, wo), lambda i: (0, 0)),         # B, resident in VMEM
        ],
        out_specs=pl.BlockSpec((tc, ho, wo), lambda i: (i, 0, 0)),
        scratch_shapes=[pltpu.VMEM((tc * h, wo), jnp.float32)],
        compiler_params=pltpu.CompilerParams(
            dimension_semantics=("parallel",),
            vmem_limit_bytes=vmem_limit),
    )(jnp.asarray(a_mat), xf, jnp.asarray(b_mat))

    return out.reshape(n, c, ho, wo)


# ----------------------------------------------------------------------------
# Thin module-like wrapper mirroring the PyTorch Downsampler.
# ----------------------------------------------------------------------------
class Downsampler:
    def __init__(self, n_planes, factor, kernel_type, phase=0, kernel_width=None,
                 support=None, sigma=None, preserve_size=False):
        assert phase in [0, 0.5], 'phase should be 0 or 0.5'
        if kernel_type == 'lanczos2':
            support = 2
            kernel_width = 4 * factor + 1
            kernel_type_ = 'lanczos'
        elif kernel_type == 'lanczos3':
            support = 3
            kernel_width = 6 * factor + 1
            kernel_type_ = 'lanczos'
        elif kernel_type == 'gauss12':
            kernel_width = 7
            sigma = 1 / 2
            kernel_type_ = 'gauss'
        elif kernel_type == 'gauss1sq2':
            kernel_width = 9
            sigma = 1.0 / np.sqrt(2)
            kernel_type_ = 'gauss'
        elif kernel_type in ['lanczos', 'gauss', 'box']:
            kernel_type_ = kernel_type
        else:
            assert False, 'wrong name kernel'

        self.kernel = get_kernel(factor, kernel_type_, phase, kernel_width,
                                 support=support, sigma=sigma)
        self.factor = factor
        self.n_planes = n_planes
        self.preserve_size = preserve_size
        if preserve_size:
            if self.kernel.shape[0] % 2 == 1:
                self.pad = int((self.kernel.shape[0] - 1) / 2.0)
            else:
                self.pad = int((self.kernel.shape[0] - self.factor) / 2.0)

    def __call__(self, x):
        # layout: NCHW float32, identical to the PyTorch module's convention.
        if self.preserve_size:
            # ReplicationPad2d == edge padding on the spatial dims (plain JAX glue).
            x = jnp.pad(x, ((0, 0), (0, 0), (self.pad, self.pad), (self.pad, self.pad)),
                        mode='edge')
        return downsample_pallas(x, self.kernel, self.factor)


# ----------------------------------------------------------------------------
if __name__ == "__main__":
    # Small, deterministic example: N=2, C=4, H=W=16, lanczos2 with factor 2
    # (kernel_width = 4*2+1 = 9, phase 0).
    n_planes, factor = 4, 2
    N, C, H, W = 2, n_planes, 16, 16

    key = jax.random.PRNGKey(0)
    x = jax.random.normal(key, (N, C, H, W), dtype=jnp.float32)

    ds = Downsampler(n_planes=n_planes, factor=factor, kernel_type='lanczos2', phase=0)
    out = ds(x)
    out = jax.block_until_ready(out)

    # Reference: full diagonal Conv2d weight, plain XLA convolution.
    kh, kw = ds.kernel.shape
    w_full = np.zeros((C, C, kh, kw), dtype=np.float32)
    for i in range(C):
        w_full[i, i] = ds.kernel.astype(np.float32)
    ref = jax.lax.conv_general_dilated(
        x, jnp.asarray(w_full), window_strides=(factor, factor), padding='VALID',
        dimension_numbers=('NCHW', 'OIHW', 'NCHW'))
    ref = jax.block_until_ready(ref)

    np.testing.assert_allclose(np.asarray(out), np.asarray(ref), rtol=1e-4, atol=1e-5)
    assert out.shape == (N, C, (H - kh) // factor + 1, (W - kw) // factor + 1)
    print("KERNEL_OK")
</pallas_src>

<mosaic_0001>
module attributes {stable_mosaic.version = 11 : i64} {
  func.func @_downsample_matmul_kernel(%arg0: i32, %arg1: memref<4x16xf32, #tpu.memory_space<vmem>>, %arg2: memref<8x16x16xf32, #tpu.memory_space<vmem>>, %arg3: memref<16x4xf32, #tpu.memory_space<vmem>>, %arg4: memref<8x4x4xf32, #tpu.memory_space<vmem>>, %arg5: memref<128x4xf32, #tpu.memory_space<vmem>>) attributes {dimension_semantics = [#tpu.dimension_semantics<parallel>], iteration_bounds = array<i64: 1>, scalar_prefetch = 0 : i64, scratch_operands = 1 : i64, tpu.core_type = #tpu.core_type<tc>, window_params = [{pipeline_mode = #tpu.pipeline_mode<synchronous>, transform_indices = @transform_0, window_bounds = array<i64: 4, 16>}, {transform_indices = @transform_1, window_bounds = array<i64: 8, 16, 16>}, {pipeline_mode = #tpu.pipeline_mode<synchronous>, transform_indices = @transform_2, window_bounds = array<i64: 16, 4>}, {transform_indices = @transform_3, window_bounds = array<i64: 8, 4, 4>}]} {
    %c0 = arith.constant 0 : index
    %c0_0 = arith.constant 0 : index
    %c0_1 = arith.constant 0 : index
    %0 = vector.load %arg2[%c0, %c0_0, %c0_1] : memref<8x16x16xf32, #tpu.memory_space<vmem>>, vector<8x16x16xf32>
    %1 = vector.shape_cast %0 : vector<8x16x16xf32> to vector<128x16xf32>
    %c0_2 = arith.constant 0 : index
    %c0_3 = arith.constant 0 : index
    %2 = vector.load %arg3[%c0_2, %c0_3] : memref<16x4xf32, #tpu.memory_space<vmem>>, vector<16x4xf32>
    %cst = arith.constant dense<0.000000e+00> : vector<128x4xf32>
    %3 = tpu.matmul %1, %2, %cst {dimension_numbers = #tpu.dot_dimension_numbers<[1], [0], [0], [1], [0, 0, 1, 1], [], []>} : vector<128x16xf32>, vector<16x4xf32>, vector<128x4xf32> -> vector<128x4xf32>
    %c0_4 = arith.constant 0 : index
    %c0_5 = arith.constant 0 : index
    %4 = vector.load %arg5[%c0_4, %c0_5] : memref<128x4xf32, #tpu.memory_space<vmem>>, vector<128x4xf32>
    tpu.vector_store %arg5[%c0_4, %c0_5], %3 {strides = array<i32>} : memref<128x4xf32, #tpu.memory_space<vmem>>, vector<128x4xf32>,
    %c0_6 = arith.constant 0 : index
    %c0_7 = arith.constant 0 : index
    %5 = vector.load %arg1[%c0_6, %c0_7] : memref<4x16xf32, #tpu.memory_space<vmem>>, vector<4x16xf32>
    %c0_i32 = arith.constant 0 : i32
    %c16_i32 = arith.constant 16 : i32
    %6 = arith.muli %c0_i32, %c16_i32 : i32
    %7 = tpu.assume_multiple %6, 16 : i32
    %8 = arith.index_cast %7 : i32 to index
    %c0_8 = arith.constant 0 : index
    %9 = vector.load %arg5[%8, %c0_8] : memref<128x4xf32, #tpu.memory_space<vmem>>, vector<16x4xf32>
    %cst_9 = arith.constant dense<0.000000e+00> : vector<4x4xf32>
    %10 = tpu.matmul %5, %9, %cst_9 {dimension_numbers = #tpu.dot_dimension_numbers<[1], [0], [0], [1], [0, 0, 1, 1], [], []>} : vector<4x16xf32>, vector<16x4xf32>, vector<4x4xf32> -> vector<4x4xf32>
    %11 = arith.index_cast %c0_i32 : i32 to index
    %c0_10 = arith.constant 0 : index
    %c0_11 = arith.constant 0 : index
    %12 = vector.load %arg4[%11, %c0_10, %c0_11] : memref<8x4x4xf32, #tpu.memory_space<vmem>>, vector<1x4x4xf32>
    %13 = vector.shape_cast %12 : vector<1x4x4xf32> to vector<4x4xf32>
    %14 = vector.shape_cast %10 : vector<4x4xf32> to vector<1x4x4xf32>
    tpu.vector_store %arg4[%11, %c0_10, %c0_11], %14 {strides = array<i32>} : memref<8x4x4xf32, #tpu.memory_space<vmem>>, vector<1x4x4xf32>,
    %c1_i32 = arith.constant 1 : i32
    %c16_i32_12 = arith.constant 16 : i32
    %15 = arith.muli %c1_i32, %c16_i32_12 : i32
    %16 = tpu.assume_multiple %15, 16 : i32
    %17 = arith.index_cast %16 : i32 to index
    %c0_13 = arith.constant 0 : index
    %18 = vector.load %arg5[%17, %c0_13] : memref<128x4xf32, #tpu.memory_space<vmem>>, vector<16x4xf32>
    %cst_14 = arith.constant dense<0.000000e+00> : vector<4x4xf32>
    %19 = tpu.matmul %5, %18, %cst_14 {dimension_numbers = #tpu.dot_dimension_numbers<[1], [0], [0], [1], [0, 0, 1, 1], [], []>} : vector<4x16xf32>, vector<16x4xf32>, vector<4x4xf32> -> vector<4x4xf32>
    %20 = arith.index_cast %c1_i32 : i32 to index
    %c0_15 = arith.constant 0 : index
    %c0_16 = arith.constant 0 : index
    %21 = vector.load %arg4[%20, %c0_15, %c0_16] : memref<8x4x4xf32, #tpu.memory_space<vmem>>, vector<1x4x4xf32>
    %22 = vector.shape_cast %21 : vector<1x4x4xf32> to vector<4x4xf32>
    %23 = vector.shape_cast %19 : vector<4x4xf32> to vector<1x4x4xf32>
    tpu.vector_store %arg4[%20, %c0_15, %c0_16], %23 {strides = array<i32>} : memref<8x4x4xf32, #tpu.memory_space<vmem>>, vector<1x4x4xf32>,
    %c2_i32 = arith.constant 2 : i32
    %c16_i32_17 = arith.constant 16 : i32
    %24 = arith.muli %c2_i32, %c16_i32_17 : i32
    %25 = tpu.assume_multiple %24, 16 : i32
    %26 = arith.index_cast %25 : i32 to index
    %c0_18 = arith.constant 0 : index
    %27 = vector.load %arg5[%26, %c0_18] : memref<128x4xf32, #tpu.memory_space<vmem>>, vector<16x4xf32>
    %cst_19 = arith.constant dense<0.000000e+00> : vector<4x4xf32>
    %28 = tpu.matmul %5, %27, %cst_19 {dimension_numbers = #tpu.dot_dimension_numbers<[1], [0], [0], [1], [0, 0, 1, 1], [], []>} : vector<4x16xf32>, vector<16x4xf32>, vector<4x4xf32> -> vector<4x4xf32>
    %29 = arith.index_cast %c2_i32 : i32 to index
    %c0_20 = arith.constant 0 : index
    %c0_21 = arith.constant 0 : index
    %30 = vector.load %arg4[%29, %c0_20, %c0_21] : memref<8x4x4xf32, #tpu.memory_space<vmem>>, vector<1x4x4xf32>
    %31 = vector.shape_cast %30 : vector<1x4x4xf32> to vector<4x4xf32>
    %32 = vector.shape_cast %28 : vector<4x4xf32> to vector<1x4x4xf32>
    tpu.vector_store %arg4[%29, %c0_20, %c0_21], %32 {strides = array<i32>} : memref<8x4x4xf32, #tpu.memory_space<vmem>>, vector<1x4x4xf32>,
    %c3_i32 = arith.constant 3 : i32
    %c16_i32_22 = arith.constant 16 : i32
    %33 = arith.muli %c3_i32, %c16_i32_22 : i32
    %34 = tpu.assume_multiple %33, 16 : i32
    %35 = arith.index_cast %34 : i32 to index
    %c0_23 = arith.constant 0 : index
    %36 = vector.load %arg5[%35, %c0_23] : memref<128x4xf32, #tpu.memory_space<vmem>>, vector<16x4xf32>
    %cst_24 = arith.constant dense<0.000000e+00> : vector<4x4xf32>
    %37 = tpu.matmul %5, %36, %cst_24 {dimension_numbers = #tpu.dot_dimension_numbers<[1], [0], [0], [1], [0, 0, 1, 1], [], []>} : vector<4x16xf32>, vector<16x4xf32>, vector<4x4xf32> -> vector<4x4xf32>
    %38 = arith.index_cast %c3_i32 : i32 to index
    %c0_25 = arith.constant 0 : index
    %c0_26 = arith.constant 0 : index
    %39 = vector.load %arg4[%38, %c0_25, %c0_26] : memref<8x4x4xf32, #tpu.memory_space<vmem>>, vector<1x4x4xf32>
    %40 = vector.shape_cast %39 : vector<1x4x4xf32> to vector<4x4xf32>
    %41 = vector.shape_cast %37 : vector<4x4xf32> to vector<1x4x4xf32>
    tpu.vector_store %arg4[%38, %c0_25, %c0_26], %41 {strides = array<i32>} : memref<8x4x4xf32, #tpu.memory_space<vmem>>, vector<1x4x4xf32>,
    %c4_i32 = arith.constant 4 : i32
    %c16_i32_27 = arith.constant 16 : i32
    %42 = arith.muli %c4_i32, %c16_i32_27 : i32
    %43 = tpu.assume_multiple %42, 16 : i32
    %44 = arith.index_cast %43 : i32 to index
    %c0_28 = arith.constant 0 : index
    %45 = vector.load %arg5[%44, %c0_28] : memref<128x4xf32, #tpu.memory_space<vmem>>, vector<16x4xf32>
    %cst_29 = arith.constant dense<0.000000e+00> : vector<4x4xf32>
    %46 = tpu.matmul %5, %45, %cst_29 {dimension_numbers = #tpu.dot_dimension_numbers<[1], [0], [0], [1], [0, 0, 1, 1], [], []>} : vector<4x16xf32>, vector<16x4xf32>, vector<4x4xf32> -> vector<4x4xf32>
    %47 = arith.index_cast %c4_i32 : i32 to index
    %c0_30 = arith.constant 0 : index
    %c0_31 = arith.constant 0 : index
    %48 = vector.load %arg4[%47, %c0_30, %c0_31] : memref<8x4x4xf32, #tpu.memory_space<vmem>>, vector<1x4x4xf32>
    %49 = vector.shape_cast %48 : vector<1x4x4xf32> to vector<4x4xf32>
    %50 = vector.shape_cast %46 : vector<4x4xf32> to vector<1x4x4xf32>
    tpu.vector_store %arg4[%47, %c0_30, %c0_31], %50 {strides = array<i32>} : memref<8x4x4xf32, #tpu.memory_space<vmem>>, vector<1x4x4xf32>,
    %c5_i32 = arith.constant 5 : i32
    %c16_i32_32 = arith.constant 16 : i32
    %51 = arith.muli %c5_i32, %c16_i32_32 : i32
    %52 = tpu.assume_multiple %51, 16 : i32
    %53 = arith.index_cast %52 : i32 to index
    %c0_33 = arith.constant 0 : index
    %54 = vector.load %arg5[%53, %c0_33] : memref<128x4xf32, #tpu.memory_space<vmem>>, vector<16x4xf32>
    %cst_34 = arith.constant dense<0.000000e+00> : vector<4x4xf32>
    %55 = tpu.matmul %5, %54, %cst_34 {dimension_numbers = #tpu.dot_dimension_numbers<[1], [0], [0], [1], [0, 0, 1, 1], [], []>} : vector<4x16xf32>, vector<16x4xf32>, vector<4x4xf32> -> vector<4x4xf32>
    %56 = arith.index_cast %c5_i32 : i32 to index
    %c0_35 = arith.constant 0 : index
    %c0_36 = arith.constant 0 : index
    %57 = vector.load %arg4[%56, %c0_35, %c0_36] : memref<8x4x4xf32, #tpu.memory_space<vmem>>, vector<1x4x4xf32>
    %58 = vector.shape_cast %57 : vector<1x4x4xf32> to vector<4x4xf32>
    %59 = vector.shape_cast %55 : vector<4x4xf32> to vector<1x4x4xf32>
    tpu.vector_store %arg4[%56, %c0_35, %c0_36], %59 {strides = array<i32>} : memref<8x4x4xf32, #tpu.memory_space<vmem>>, vector<1x4x4xf32>,
    %c6_i32 = arith.constant 6 : i32
    %c16_i32_37 = arith.constant 16 : i32
    %60 = arith.muli %c6_i32, %c16_i32_37 : i32
    %61 = tpu.assume_multiple %60, 16 : i32
    %62 = arith.index_cast %61 : i32 to index
    %c0_38 = arith.constant 0 : index
    %63 = vector.load %arg5[%62, %c0_38] : memref<128x4xf32, #tpu.memory_space<vmem>>, vector<16x4xf32>
    %cst_39 = arith.constant dense<0.000000e+00> : vector<4x4xf32>
    %64 = tpu.matmul %5, %63, %cst_39 {dimension_numbers = #tpu.dot_dimension_numbers<[1], [0], [0], [1], [0, 0, 1, 1], [], []>} : vector<4x16xf32>, vector<16x4xf32>, vector<4x4xf32> -> vector<4x4xf32>
    %65 = arith.index_cast %c6_i32 : i32 to index
    %c0_40 = arith.constant 0 : index
    %c0_41 = arith.constant 0 : index
    %66 = vector.load %arg4[%65, %c0_40, %c0_41] : memref<8x4x4xf32, #tpu.memory_space<vmem>>, vector<1x4x4xf32>
    %67 = vector.shape_cast %66 : vector<1x4x4xf32> to vector<4x4xf32>
    %68 = vector.shape_cast %64 : vector<4x4xf32> to vector<1x4x4xf32>
    tpu.vector_store %arg4[%65, %c0_40, %c0_41], %68 {strides = array<i32>} : memref<8x4x4xf32, #tpu.memory_space<vmem>>, vector<1x4x4xf32>,
    %c7_i32 = arith.constant 7 : i32
    %c16_i32_42 = arith.constant 16 : i32
    %69 = arith.muli %c7_i32, %c16_i32_42 : i32
    %70 = tpu.assume_multiple %69, 16 : i32
    %71 = arith.index_cast %70 : i32 to index
    %c0_43 = arith.constant 0 : index
    %72 = vector.load %arg5[%71, %c0_43] : memref<128x4xf32, #tpu.memory_space<vmem>>, vector<16x4xf32>
    %cst_44 = arith.constant dense<0.000000e+00> : vector<4x4xf32>
    %73 = tpu.matmul %5, %72, %cst_44 {dimension_numbers = #tpu.dot_dimension_numbers<[1], [0], [0], [1], [0, 0, 1, 1], [], []>} : vector<4x16xf32>, vector<16x4xf32>, vector<4x4xf32> -> vector<4x4xf32>
    %74 = arith.index_cast %c7_i32 : i32 to index
    %c0_45 = arith.constant 0 : index
    %c0_46 = arith.constant 0 : index
    %75 = vector.load %arg4[%74, %c0_45, %c0_46] : memref<8x4x4xf32, #tpu.memory_space<vmem>>, vector<1x4x4xf32>
    %76 = vector.shape_cast %75 : vector<1x4x4xf32> to vector<4x4xf32>
    %77 = vector.shape_cast %73 : vector<4x4xf32> to vector<1x4x4xf32>
    tpu.vector_store %arg4[%74, %c0_45, %c0_46], %77 {strides = array<i32>} : memref<8x4x4xf32, #tpu.memory_space<vmem>>, vector<1x4x4xf32>,
    %c8_i32 = arith.constant 8 : i32
    return
  }
  func.func @transform_0(%arg0: i32) -> (i32, i32) {
    %c0_i32 = arith.constant 0 : i32
    %c0_i32_0 = arith.constant 0 : i32
    %c0_i32_1 = arith.constant 0 : i32
    return %c0_i32, %c0_i32_0 : i32, i32
  }
  func.func @transform_1(%arg0: i32) -> (i32, i32, i32) {
    %c0_i32 = arith.constant 0 : i32
    %c0_i32_0 = arith.constant 0 : i32
    %c0_i32_1 = arith.constant 0 : i32
    return %arg0, %c0_i32, %c0_i32_0 : i32, i32, i32
  }
  func.func @transform_2(%arg0: i32) -> (i32, i32) {
    %c0_i32 = arith.constant 0 : i32
    %c0_i32_0 = arith.constant 0 : i32
    %c0_i32_1 = arith.constant 0 : i32
    return %c0_i32, %c0_i32_0 : i32, i32
  }
  func.func @transform_3(%arg0: i32) -> (i32, i32, i32) {
    %c0_i32 = arith.constant 0 : i32
    %c0_i32_0 = arith.constant 0 : i32
    %c0_i32_1 = arith.constant 0 : i32
    return %arg0, %c0_i32, %c0_i32_0 : i32, i32, i32
  }
}

</mosaic_0001>

<llo_original>
// kernel: tpu_custom_call.1
$region0: #{tpu_custom_call.1}
  #allocation0 [shape = 'u32[]', space=smem, size = 0x4, offset = 0x4, fixed_abs, tag = 'smem constant byte address 0x4 - core index']
  #allocation1 [shape = 'u32[72,128]{1,0:T(1,128)}', space=vmem, size = 0x9000, scoped, tag = 'internal scratch']
  #allocation2 [shape = 'f32[128,4]{1,0:T(8,128)}', space=vmem, size = 0x10000, scoped, tag = 'scratch operand']
  %s0 = inlined_call_operand.vmem [shape: f32[4,16], index: 0, kind: input, shape index: {}]
  %s1 = inlined_call_operand.hbm [shape: f32[8,16,16], index: 1, kind: input, shape index: {}]
  %s2 = inlined_call_operand.vmem [shape: f32[16,4], index: 2, kind: input, shape index: {}]
  %s3 = inlined_call_operand.vmem [shape: f32[8,4,4], index: 3, kind: output, shape index: {}]
  %s4 = sld [smem:[#allocation0]]
  $region26: #{tpu_custom_call.1} parent=0
    _
  %s6 = ssub.s32 1, %s4
  %s7 = scalar_select 0, %s6, %s4
  $region1: #{tpu_custom_call.1} parent=0
    #allocation3 [shape = 'u8[65536]{0}', space=vmem, size = 0x10000, scoped, tag = 'input window, operand 1, single buffered']
    #allocation4 [shape = 's32[1]{0}', space=sflag, size = 0x4, scoped, tag = 'scoped memory for tpu_custom_call.1']
    %8 = vsyncpa [#allocation4], 0
    // Predicated region
    $region2: #{tpu_custom_call.1} parent=1 // pred_check
      _
    $region3: #{tpu_custom_call.1} parent=1 // pred_check_branch
      %10 = sbr.rel (0) target = $region5
    $region4: #{tpu_custom_call.1} parent=1 // pred_region
      _
    $region5: #{tpu_custom_call.1} parent=1 // pred_fallthru
      _
    // Predicated region
    $region6: #{tpu_custom_call.1} parent=1 // pred_check
      _
    $region7: #{tpu_custom_call.1} parent=1 // pred_check_branch
      %12 = sbr.rel (0) target = $region9
    $region8: #{tpu_custom_call.1} parent=1 // pred_region
      %14 = vsyncadd [#allocation4], 0
      %s15 = sshll.u32 %s1, 4
      %s16 = int_to_ptr.hbm [resolvable:$true] %s15
      %s17 = sshll.u32 [#allocation3], 4
      %s18 = int_to_ptr.vmem [resolvable:$true] %s17
      %23 = dma.hbm_to_vmem [thread:$0]  %s16, 2048, %s18, [#allocation4], 128, 128, 8
    $region9: #{tpu_custom_call.1} parent=1 // pred_fallthru
      _
    // Predicated region
    $region10: #{tpu_custom_call.1} parent=1 // pred_check
      _
    $region11: #{tpu_custom_call.1} parent=1 // pred_check_branch
      %25 = sbr.rel (0) target = $region13
    $region12: #{tpu_custom_call.1} parent=1 // pred_region
      _
    $region13: #{tpu_custom_call.1} parent=1 // pred_fallthru
      _
    // Predicated region
    $region14: #{tpu_custom_call.1} parent=1 // pred_check
      _
    $region15: #{tpu_custom_call.1} parent=1 // pred_check_branch
      %27 = sbr.rel (0) target = $region17
    $region16: #{tpu_custom_call.1} parent=1 // pred_region
      %29 = dma.done [#allocation4], 2048
    $region17: #{tpu_custom_call.1} parent=1 // pred_fallthru
      _
    %v30 = vld [vmem:[#allocation3] sm:$0xff]
    %v31 = vld [vmem:[#allocation3 + $0x8] sm:$0xff]
    %v32 = vld [vmem:[#allocation3 + $0x10] sm:$0xff]
    %v33 = vld [vmem:[#allocation3 + $0x18] sm:$0xff]
    %v34 = vld [vmem:[#allocation3 + $0x20] sm:$0xff]
    %v35 = vld [vmem:[#allocation3 + $0x28] sm:$0xff]
    %v36 = vld [vmem:[#allocation3 + $0x30] sm:$0xff]
    %v37 = vld [vmem:[#allocation3 + $0x38] sm:$0xff]
    %v38 = vld [vmem:[#allocation3 + $0x40] sm:$0xff]
    %v39 = vld [vmem:[#allocation3 + $0x48] sm:$0xff]
    %v40 = vld [vmem:[#allocation3 + $0x50] sm:$0xff]
    %v41 = vld [vmem:[#allocation3 + $0x58] sm:$0xff]
    %v42 = vld [vmem:[#allocation3 + $0x60] sm:$0xff]
    %v43 = vld [vmem:[#allocation3 + $0x68] sm:$0xff]
    %v44 = vld [vmem:[#allocation3 + $0x70] sm:$0xff]
    %v45 = vld [vmem:[#allocation3 + $0x78] sm:$0xff]
    %v46 = vld [vmem:[%s2] sm:$0xff]
    %v47 = vld [vmem:[%s2 + $0x8] sm:$0xff]
    %vm48 = vcmask 130048
    %v50 = vsel %vm48, %v30, 0
    %v53 = vsel %vm48, %v31, 0
    %v56 = vsel %vm48, %v32, 0
    %v59 = vsel %vm48, %v33, 0
    %v62 = vsel %vm48, %v34, 0
    %v65 = vsel %vm48, %v35, 0
    %v68 = vsel %vm48, %v36, 0
    %v71 = vsel %vm48, %v37, 0
    %v74 = vsel %vm48, %v38, 0
    %v77 = vsel %vm48, %v39, 0
    %v80 = vsel %vm48, %v40, 0
    %v83 = vsel %vm48, %v41, 0
    %v86 = vsel %vm48, %v42, 0
    %v89 = vsel %vm48, %v43, 0
    %v92 = vsel %vm48, %v44, 0
    %v95 = vsel %vm48, %v45, 0
    %97 = vmatpush.msra.mxu0 0.0
    %98 = vmatpush.msra.mxu0 0.0
    %99 = vmatpush.msra.mxu0 0.0
    %100 = vmatpush.msra.mxu0 0.0
    %101 = vmatpush.msra.mxu0 0.0
    %102 = vmatpush.msra.mxu0 0.0
    %103 = vmatpush.msra.mxu0 0.0
    %104 = vmatpush.msra.mxu0 0.0
    %105 = vmatpush.msra.mxu0 0.0
    %106 = vmatpush.msra.mxu0 0.0
    %107 = vmatpush.msra.mxu0 0.0
    %108 = vmatpush.msra.mxu0 0.0
    %109 = vmatpush.msra.mxu0 0.0
    %110 = vmatpush.msra.mxu0 0.0
    %111 = vmatpush.msra.mxu0 %v47
    %112 = vmatpush.msra.mxu0 %v46
    %113 = vmatmul.f32.gmra.mxu0 %v50
    %v114 = vpop.f32.mrf.mxu0
    %v115 = vadd.f32 0.0, %v114
    %116 = vmatmul.f32.gmra.mxu0 %v53
    %v117 = vpop.f32.mrf.mxu0
    %v118 = vadd.f32 0.0, %v117
    %119 = vmatmul.f32.gmra.mxu0 %v56
    %v120 = vpop.f32.mrf.mxu0
    %v121 = vadd.f32 0.0, %v120
    %122 = vmatmul.f32.gmra.mxu0 %v59
    %v123 = vpop.f32.mrf.mxu0
    %v124 = vadd.f32 0.0, %v123
    %125 = vmatmul.f32.gmra.mxu0 %v62
    %v126 = vpop.f32.mrf.mxu0
    %v127 = vadd.f32 0.0, %v126
    %128 = vmatmul.f32.gmra.mxu0 %v65
    %v129 = vpop.f32.mrf.mxu0
    %v130 = vadd.f32 0.0, %v129
    %131 = vmatmul.f32.gmra.mxu0 %v68
    %v132 = vpop.f32.mrf.mxu0
    %v133 = vadd.f32 0.0, %v132
    %134 = vmatmul.f32.gmra.mxu0 %v71
    %v135 = vpop.f32.mrf.mxu0
    %v136 = vadd.f32 0.0, %v135
    %137 = vmatmul.f32.gmra.mxu0 %v74
    %v138 = vpop.f32.mrf.mxu0
    %v139 = vadd.f32 0.0, %v138
    %140 = vmatmul.f32.gmra.mxu0 %v77
    %v141 = vpop.f32.mrf.mxu0
    %v142 = vadd.f32 0.0, %v141
    %143 = vmatmul.f32.gmra.mxu0 %v80
    %v144 = vpop.f32.mrf.mxu0
    %v145 = vadd.f32 0.0, %v144
    %146 = vmatmul.f32.gmra.mxu0 %v83
    %v147 = vpop.f32.mrf.mxu0
    %v148 = vadd.f32 0.0, %v147
    %149 = vmatmul.f32.gmra.mxu0 %v86
    %v150 = vpop.f32.mrf.mxu0
    %v151 = vadd.f32 0.0, %v150
    %152 = vmatmul.f32.gmra.mxu0 %v89
    %v153 = vpop.f32.mrf.mxu0
    %v154 = vadd.f32 0.0, %v153
    %155 = vmatmul.f32.gmra.mxu0 %v92
    %v156 = vpop.f32.mrf.mxu0
    %v157 = vadd.f32 0.0, %v156
    %158 = vmatmul.f32.gmra.mxu0 %v95
    %v159 = vpop.f32.mrf.mxu0
    %v160 = vadd.f32 0.0, %v159
    %161 = vdwg.mxu0
    %vm162 = vcmask 31744
    %163 = vst.msk [vmem:[#allocation2] sm:$0xff] %vm162, %v115
    %164 = vst.msk [vmem:[#allocation2 + $0x8] sm:$0xff] %vm162, %v118
    %165 = vst.msk [vmem:[#allocation2 + $0x10] sm:$0xff] %vm162, %v121
    %166 = vst.msk [vmem:[#allocation2 + $0x18] sm:$0xff] %vm162, %v124
    %167 = vst.msk [vmem:[#allocation2 + $0x20] sm:$0xff] %vm162, %v127
    %168 = vst.msk [vmem:[#allocation2 + $0x28] sm:$0xff] %vm162, %v130
    %169 = vst.msk [vmem:[#allocation2 + $0x30] sm:$0xff] %vm162, %v133
    %170 = vst.msk [vmem:[#allocation2 + $0x38] sm:$0xff] %vm162, %v136
    %171 = vst.msk [vmem:[#allocation2 + $0x40] sm:$0xff] %vm162, %v139
    %172 = vst.msk [vmem:[#allocation2 + $0x48] sm:$0xff] %vm162, %v142
    %173 = vst.msk [vmem:[#allocation2 + $0x50] sm:$0xff] %vm162, %v145
    %174 = vst.msk [vmem:[#allocation2 + $0x58] sm:$0xff] %vm162, %v148
    %175 = vst.msk [vmem:[#allocation2 + $0x60] sm:$0xff] %vm162, %v151
    %176 = vst.msk [vmem:[#allocation2 + $0x68] sm:$0xff] %vm162, %v154
    %177 = vst.msk [vmem:[#allocation2 + $0x70] sm:$0xff] %vm162, %v157
    %178 = vst.msk [vmem:[#allocation2 + $0x78] sm:$0xff] %vm162, %v160
    %v179 = vld [vmem:[%s0] sm:$0xf]
    %v180 = vld [vmem:[#allocation2] sm:$0xff]
    %v181 = vld [vmem:[#allocation2 + $0x8] sm:$0xff]
    %v183 = vsel %vm48, %v179, 0
    %185 = vmatpush.msra.mxu0 0.0
    %186 = vmatpush.msra.mxu0 0.0
    %187 = vmatpush.msra.mxu0 0.0
    %188 = vmatpush.msra.mxu0 0.0
    %189 = vmatpush.msra.mxu0 0.0
    %190 = vmatpush.msra.mxu0 0.0
    %191 = vmatpush.msra.mxu0 0.0
    %192 = vmatpush.msra.mxu0 0.0
    %193 = vmatpush.msra.mxu0 0.0
    %194 = vmatpush.msra.mxu0 0.0
    %195 = vmatpush.msra.mxu0 0.0
    %196 = vmatpush.msra.mxu0 0.0
    %197 = vmatpush.msra.mxu0 0.0
    %198 = vmatpush.msra.mxu0 0.0
    %199 = vmatpush.msra.mxu0 %v181
    %200 = vmatpush.msra.mxu0 %v180
    %201 = vmatmul.f32.gmra.mxu0 %v183
    %v202 = vpop.f32.mrf.mxu0
    %v203 = vadd.f32 0.0, %v202
    %204 = vdwg.mxu0
    %vm205 = vcmask 27648
    %206 = vst.msk [vmem:[%s3] sm:$0xf] %vm205, %v203
    %s207 = scalar_lea.vmem [#allocation2], 16
    %v208 = vld [vmem:[%s207] sm:$0xff]
    %v209 = vld [vmem:[%s207 + $0x8] sm:$0xff]
    %210 = vmatpush.msra.mxu0 0.0
    %211 = vmatpush.msra.mxu0 0.0
    %212 = vmatpush.msra.mxu0 0.0
    %213 = vmatpush.msra.mxu0 0.0
    %214 = vmatpush.msra.mxu0 0.0
    %215 = vmatpush.msra.mxu0 0.0
    %216 = vmatpush.msra.mxu0 0.0
    %217 = vmatpush.msra.mxu0 0.0
    %218 = vmatpush.msra.mxu0 0.0
    %219 = vmatpush.msra.mxu0 0.0
    %220 = vmatpush.msra.mxu0 0.0
    %221 = vmatpush.msra.mxu0 0.0
    %222 = vmatpush.msra.mxu0 0.0
    %223 = vmatpush.msra.mxu0 0.0
    %224 = vmatpush.msra.mxu0 %v209
    %225 = vmatpush.msra.mxu0 %v208
    %226 = vmatmul.f32.gmra.mxu0 %v183
    %v227 = vpop.f32.mrf.mxu0
    %v228 = vadd.f32 0.0, %v227
    %229 = vdwg.mxu0
    %s230 = scalar_lea.vmem %s3, 4
    %231 = vst.msk [vmem:[%s230] sm:$0xf] %vm205, %v228
    %s232 = scalar_lea.vmem [#allocation2], 32
    %v233 = vld [vmem:[%s232] sm:$0xff]
    %v234 = vld [vmem:[%s232 + $0x8] sm:$0xff]
    %235 = vmatpush.msra.mxu0 0.0
    %236 = vmatpush.msra.mxu0 0.0
    %237 = vmatpush.msra.mxu0 0.0
    %238 = vmatpush.msra.mxu0 0.0
    %239 = vmatpush.msra.mxu0 0.0
    %240 = vmatpush.msra.mxu0 0.0
    %241 = vmatpush.msra.mxu0 0.0
    %242 = vmatpush.msra.mxu0 0.0
    %243 = vmatpush.msra.mxu0 0.0
    %244 = vmatpush.msra.mxu0 0.0
    %245 = vmatpush.msra.mxu0 0.0
    %246 = vmatpush.msra.mxu0 0.0
    %247 = vmatpush.msra.mxu0 0.0
    %248 = vmatpush.msra.mxu0 0.0
    %249 = vmatpush.msra.mxu0 %v234
    %250 = vmatpush.msra.mxu0 %v233
    %251 = vmatmul.f32.gmra.mxu0 %v183
    %v252 = vpop.f32.mrf.mxu0
    %v253 = vadd.f32 0.0, %v252
    %254 = vdwg.mxu0
    %s255 = scalar_lea.vmem %s3, 8
    %256 = vst.msk [vmem:[%s255] sm:$0xf] %vm205, %v253
    %s257 = scalar_lea.vmem [#allocation2], 48
    %v258 = vld [vmem:[%s257] sm:$0xff]
    %v259 = vld [vmem:[%s257 + $0x8] sm:$0xff]
    %260 = vmatpush.msra.mxu0 0.0
    %261 = vmatpush.msra.mxu0 0.0
    %262 = vmatpush.msra.mxu0 0.0
    %263 = vmatpush.msra.mxu0 0.0
    %264 = vmatpush.msra.mxu0 0.0
    %265 = vmatpush.msra.mxu0 0.0
    %266 = vmatpush.msra.mxu0 0.0
    %267 = vmatpush.msra.mxu0 0.0
    %268 = vmatpush.msra.mxu0 0.0
    %269 = vmatpush.msra.mxu0 0.0
    %270 = vmatpush.msra.mxu0 0.0
    %271 = vmatpush.msra.mxu0 0.0
    %272 = vmatpush.msra.mxu0 0.0
    %273 = vmatpush.msra.mxu0 0.0
    %274 = vmatpush.msra.mxu0 %v259
    %275 = vmatpush.msra.mxu0 %v258
    %276 = vmatmul.f32.gmra.mxu0 %v183
    %v277 = vpop.f32.mrf.mxu0
    %v278 = vadd.f32 0.0, %v277
    %279 = vdwg.mxu0
    %s280 = scalar_lea.vmem %s3, 12
    %281 = vst.msk [vmem:[%s280] sm:$0xf] %vm205, %v278
    %s282 = scalar_lea.vmem [#allocation2], 64
    %v283 = vld [vmem:[%s282] sm:$0xff]
    %v284 = vld [vmem:[%s282 + $0x8] sm:$0xff]
    %285 = vmatpush.msra.mxu0 0.0
    %286 = vmatpush.msra.mxu0 0.0
    %287 = vmatpush.msra.mxu0 0.0
    %288 = vmatpush.msra.mxu0 0.0
    %289 = vmatpush.msra.mxu0 0.0
    %290 = vmatpush.msra.mxu0 0.0
    %291 = vmatpush.msra.mxu0 0.0
    %292 = vmatpush.msra.mxu0 0.0
    %293 = vmatpush.msra.mxu0 0.0
    %294 = vmatpush.msra.mxu0 0.0
    %295 = vmatpush.msra.mxu0 0.0
    %296 = vmatpush.msra.mxu0 0.0
    %297 = vmatpush.msra.mxu0 0.0
    %298 = vmatpush.msra.mxu0 0.0
    %299 = vmatpush.msra.mxu0 %v284
    %300 = vmatpush.msra.mxu0 %v283
    %301 = vmatmul.f32.gmra.mxu0 %v183
    %v302 = vpop.f32.mrf.mxu0
    %v303 = vadd.f32 0.0, %v302
    %304 = vdwg.mxu0
    %s305 = scalar_lea.vmem %s3, 16
    %306 = vst.msk [vmem:[%s305] sm:$0xf] %vm205, %v303
    %s307 = scalar_lea.vmem [#allocation2], 80
    %v308 = vld [vmem:[%s307] sm:$0xff]
    %v309 = vld [vmem:[%s307 + $0x8] sm:$0xff]
    %310 = vmatpush.msra.mxu0 0.0
    %311 = vmatpush.msra.mxu0 0.0
    %312 = vmatpush.msra.mxu0 0.0
    %313 = vmatpush.msra.mxu0 0.0
    %314 = vmatpush.msra.mxu0 0.0
    %315 = vmatpush.msra.mxu0 0.0
    %316 = vmatpush.msra.mxu0 0.0
    %317 = vmatpush.msra.mxu0 0.0
    %318 = vmatpush.msra.mxu0 0.0
    %319 = vmatpush.msra.mxu0 0.0
    %320 = vmatpush.msra.mxu0 0.0
    %321 = vmatpush.msra.mxu0 0.0
    %322 = vmatpush.msra.mxu0 0.0
    %323 = vmatpush.msra.mxu0 0.0
    %324 = vmatpush.msra.mxu0 %v309
    %325 = vmatpush.msra.mxu0 %v308
    %326 = vmatmul.f32.gmra.mxu0 %v183
    %v327 = vpop.f32.mrf.mxu0
    %v328 = vadd.f32 0.0, %v327
    %329 = vdwg.mxu0
    %s330 = scalar_lea.vmem %s3, 20
    %331 = vst.msk [vmem:[%s330] sm:$0xf] %vm205, %v328
    %s332 = scalar_lea.vmem [#allocation2], 96
    %v333 = vld [vmem:[%s332] sm:$0xff]
    %v334 = vld [vmem:[%s332 + $0x8] sm:$0xff]
    %335 = vmatpush.msra.mxu0 0.0
    %336 = vmatpush.msra.mxu0 0.0
    %337 = vmatpush.msra.mxu0 0.0
    %338 = vmatpush.msra.mxu0 0.0
    %339 = vmatpush.msra.mxu0 0.0
    %340 = vmatpush.msra.mxu0 0.0
    %341 = vmatpush.msra.mxu0 0.0
    %342 = vmatpush.msra.mxu0 0.0
    %343 = vmatpush.msra.mxu0 0.0
    %344 = vmatpush.msra.mxu0 0.0
    %345 = vmatpush.msra.mxu0 0.0
    %346 = vmatpush.msra.mxu0 0.0
    %347 = vmatpush.msra.mxu0 0.0
    %348 = vmatpush.msra.mxu0 0.0
    %349 = vmatpush.msra.mxu0 %v334
    %350 = vmatpush.msra.mxu0 %v333
    %351 = vmatmul.f32.gmra.mxu0 %v183
    %v352 = vpop.f32.mrf.mxu0
    %v353 = vadd.f32 0.0, %v352
    %354 = vdwg.mxu0
    %s355 = scalar_lea.vmem %s3, 24
    %356 = vst.msk [vmem:[%s355] sm:$0xf] %vm205, %v353
    %s357 = scalar_lea.vmem [#allocation2], 112
    %v358 = vld [vmem:[%s357] sm:$0xff]
    %v359 = vld [vmem:[%s357 + $0x8] sm:$0xff]
    %360 = vmatpush.msra.mxu0 0.0
    %361 = vmatpush.msra.mxu0 0.0
    %362 = vmatpush.msra.mxu0 0.0
    %363 = vmatpush.msra.mxu0 0.0
    %364 = vmatpush.msra.mxu0 0.0
    %365 = vmatpush.msra.mxu0 0.0
    %366 = vmatpush.msra.mxu0 0.0
    %367 = vmatpush.msra.mxu0 0.0
    %368 = vmatpush.msra.mxu0 0.0
    %369 = vmatpush.msra.mxu0 0.0
    %370 = vmatpush.msra.mxu0 0.0
    %371 = vmatpush.msra.mxu0 0.0
    %372 = vmatpush.msra.mxu0 0.0
    %373 = vmatpush.msra.mxu0 0.0
    %374 = vmatpush.msra.mxu0 %v359
    %375 = vmatpush.msra.mxu0 %v358
    %376 = vmatmul.f32.gmra.mxu0 %v183
    %v377 = vpop.f32.mrf.mxu0
    %v378 = vadd.f32 0.0, %v377
    %379 = vdwg.mxu0
    %s380 = scalar_lea.vmem %s3, 28
    %381 = vst.msk [vmem:[%s380] sm:$0xf] %vm205, %v378
    // Predicated region
    $region18: #{tpu_custom_call.1} parent=1 // pred_check
      _
    $region19: #{tpu_custom_call.1} parent=1 // pred_check_branch
      %383 = sbr.rel (0) target = $region21
    $region20: #{tpu_custom_call.1} parent=1 // pred_region
      _
    $region21: #{tpu_custom_call.1} parent=1 // pred_fallthru
      _
    // Predicated region
    $region22: #{tpu_custom_call.1} parent=1 // pred_check
      _
    $region23: #{tpu_custom_call.1} parent=1 // pred_check_branch
      %385 = sbr.rel (0) target = $region25
    $region24: #{tpu_custom_call.1} parent=1 // pred_region
      _
    $region25: #{tpu_custom_call.1} parent=1 // pred_fallthru
      _
    %386 = vsyncpa [#allocation4], 1

</llo_original>
